<compile_context>
chip_gen: v5e
topology: v5e:2x2
jax: 0.10.0
libtpu: 0.0.40
codegen_flags: <defaults>
</compile_context>

<pallas_src>
import functools

import jax
import jax.numpy as jnp
from jax.experimental import pallas as pl
from jax.experimental.pallas import tpu as pltpu


def _cdiv(a, b):
    return -(-a // b)


def _round_up(x, m):
    return ((x + m - 1) // m) * m


_TARGET_TILE_BYTES = 2 * 1024 * 1024   # per-input, per-pipeline-buffer DMA tile
_CHUNK_ROWS = 256                      # rows per in-kernel VPU chunk (~128 KiB f32 temps)


def _comp_loss_kernel(x_ref, y_ref, acc_ref, *,
                      w_bce, w_mse, total, tile_rows, chunk,
                      steps_per_shard, need_mask):
    s = pl.program_id(0)                 # shard axis (CORE_PARALLEL when num_shards > 1)
    j = pl.program_id(1)                 # streaming / reduction axis
    blk = s * steps_per_shard + j        # global block index (unclamped on purpose)

    @pl.when(j == 0)
    def _():
        acc_ref[...] = jnp.zeros_like(acc_ref)

    n_chunks = tile_rows // chunk

    def accumulate(masked):
        def body(c, carry):
            r0 = pl.multiple_of(c * chunk, chunk)
            # Native-dtype chunks out of the DMA'd tile; upcast on the VPU.
            x = x_ref[pl.ds(r0, chunk), :].astype(jnp.float32)
            y = y_ref[pl.ds(r0, chunk), :].astype(jnp.float32)
            # BCEWithLogits (PyTorch's numerically stable form) and MSE, fused.
            bce = jnp.maximum(x, 0.0) - x * y + jnp.log1p(jnp.exp(-jnp.abs(x)))
            diff = x - y
            loss = w_bce * bce + w_mse * diff * diff
            if masked:
                # Only executed on the boundary block: zero out the tail past `total`
                # (unspecified partial-block data and/or the <=127 pad zeros).
                row = jax.lax.broadcasted_iota(jnp.int32, (chunk, 128), 0)
                lane = jax.lax.broadcasted_iota(jnp.int32, (chunk, 128), 1)
                gidx = (blk * tile_rows + r0 + row) * 128 + lane
                loss = jnp.where(gidx < total, loss, 0.0)
            # Pure VPU fold down to the vreg-shaped (8,128) accumulator block.
            acc_ref[...] += loss.reshape(-1, 8, 128).sum(axis=0)
            return carry
        jax.lax.fori_loop(0, n_chunks, body, 0)

    if need_mask:
        # Boundary gate: any block whose covered range extends past the true element
        # count (covers the partial last block and any fully-out-of-range shard steps).
        is_boundary = (blk + 1) * (tile_rows * 128) > total

        @pl.when(is_boundary)
        def _():
            accumulate(True)

        @pl.when(jnp.logical_not(is_boundary))
        def _():
            accumulate(False)
    else:
        accumulate(False)


def composition_losses(output, label, weights=(0.7, 0.3), *, num_shards=1):
    """Weighted sum of [BCEWithLogitsLoss, MSELoss] (mean reduction), fused in one
    Pallas kernel. Use num_shards=2 on dual-TensorCore chips (v7x); leave 1 otherwise."""
    assert output.shape == label.shape
    total = int(output.size)

    # ---- slab layout (no full-array copy on the fast path) -------------------------
    pad = (-total) % 128
    rows = (total + pad) // 128

    def to_slab(a):
        flat = a.reshape(-1)                      # free; keeps native dtype
        if pad:
            # Slow-ish path only for shapes not a multiple of 128: pad <=127 elements
            # (XLA still copies the array once; the in-kernel boundary mask removes the
            # pad's BCE(0,0)=log2 contribution).
            flat = jnp.pad(flat, (0, pad))
        return flat.reshape(rows, 128)

    x2d = to_slab(output)
    y2d = to_slab(label)

    # ---- tile sizing by bytes -------------------------------------------------------
    itemsize = max(jnp.dtype(output.dtype).itemsize, jnp.dtype(label.dtype).itemsize)
    chunk = _CHUNK_ROWS
    cap = max(chunk, (_TARGET_TILE_BYTES // (128 * itemsize)) // chunk * chunk)
    if rows <= chunk:
        tile_rows = _round_up(rows, 8)
        chunk = tile_rows
    else:
        steps = _cdiv(rows, cap)
        tile_rows = min(cap, _round_up(_cdiv(rows, steps), chunk))

    n_blocks = _cdiv(rows, tile_rows)
    steps_per_shard = _cdiv(n_blocks, num_shards)
    covered = num_shards * steps_per_shard * tile_rows * 128
    need_mask = covered != total

    # ---- grid / specs ---------------------------------------------------------------
    if num_shards * steps_per_shard == n_blocks:
        in_map = lambda s, j: (s * steps_per_shard + j, 0)
    else:
        # Clamp fully-out-of-range shard steps to the last valid block (their
        # contribution is zeroed by the in-kernel mask, which uses the unclamped index).
        last = n_blocks - 1
        in_map = lambda s, j: (jnp.minimum(s * steps_per_shard + j, last), 0)

    kernel = functools.partial(
        _comp_loss_kernel,
        w_bce=float(weights[0]), w_mse=float(weights[1]),
        total=total, tile_rows=tile_rows, chunk=chunk,
        steps_per_shard=steps_per_shard, need_mask=need_mask)

    shard_sem = pltpu.CORE_PARALLEL if num_shards > 1 else pltpu.ARBITRARY

    cost = pl.CostEstimate(
        flops=12 * total,
        transcendentals=2 * total,
        bytes_accessed=int(output.nbytes) + int(label.nbytes) + num_shards * 8 * 128 * 4)

    partials = pl.pallas_call(
        kernel,
        out_shape=jax.ShapeDtypeStruct((num_shards * 8, 128), jnp.float32),
        grid_spec=pltpu.PrefetchScalarGridSpec(
            num_scalar_prefetch=0,
            grid=(num_shards, steps_per_shard),
            in_specs=[
                pl.BlockSpec((tile_rows, 128), in_map),
                pl.BlockSpec((tile_rows, 128), in_map),
            ],
            out_specs=pl.BlockSpec((8, 128), lambda s, j: (s, 0)),
        ),
        compiler_params=pltpu.CompilerParams(
            dimension_semantics=(shard_sem, pltpu.ARBITRARY),
            vmem_limit_bytes=32 * 1024 * 1024),
        cost_estimate=cost,
    )(x2d, y2d)

    # Final tiny cross-lane/shard reduce + mean over the TRUE element count.
    return jnp.sum(partials) / total


def _reference(output, label, weights=(0.7, 0.3)):
    x = output.astype(jnp.float32)
    y = label.astype(jnp.float32)
    bce = jnp.mean(jnp.maximum(x, 0.0) - x * y + jnp.log1p(jnp.exp(-jnp.abs(x))))
    mse = jnp.mean((x - y) ** 2)
    return weights[0] * bce + weights[1] * mse


if __name__ == "__main__":
    key = jax.random.PRNGKey(0)
    k1, k2, k3, k4 = jax.random.split(key, 4)

    # Test 1: f32, exactly tileable NCHW — batch=2, channels=4, 16x16 spatial.
    out1 = jax.random.normal(k1, (2, 4, 16, 16), dtype=jnp.float32)
    lab1 = jax.random.bernoulli(k2, 0.5, (2, 4, 16, 16)).astype(jnp.float32)
    loss1 = jax.block_until_ready(composition_losses(out1, lab1, weights=(0.7, 0.3)))
    ref1 = _reference(out1, lab1, weights=(0.7, 0.3))
    assert jnp.allclose(loss1, ref1, rtol=1e-5, atol=1e-5), (loss1, ref1)

    # Test 2: awkward shape exercising the boundary-block masked path (+ tiny 128-pad).
    out2 = jax.random.normal(k3, (2, 3, 17, 19), dtype=jnp.float32)
    lab2 = jax.random.bernoulli(k4, 0.5, (2, 3, 17, 19)).astype(jnp.float32)
    loss2 = jax.block_until_ready(composition_losses(out2, lab2, weights=(0.7, 0.3)))
    ref2 = _reference(out2, lab2, weights=(0.7, 0.3))
    assert jnp.allclose(loss2, ref2, rtol=1e-5, atol=1e-5), (loss2, ref2)

    # Test 3: bf16 logits streamed in native dtype (no wrapper-side cast).
    out3 = out1.astype(jnp.bfloat16)
    loss3 = jax.block_until_ready(composition_losses(out3, lab1, weights=(0.7, 0.3)))
    ref3 = _reference(out3, lab1, weights=(0.7, 0.3))
    assert jnp.allclose(loss3, ref3, rtol=1e-4, atol=1e-4), (loss3, ref3)

    print("KERNEL_OK")
</pallas_src>

<mosaic_0001>
module attributes {stable_mosaic.version = 11 : i64} {
  func.func @_comp_loss_kernel(%arg0: i32, %arg1: i32, %arg2: memref<16x128xf32, #tpu.memory_space<vmem>>, %arg3: memref<16x128xf32, #tpu.memory_space<vmem>>, %arg4: memref<8x128xf32, #tpu.memory_space<vmem>>) attributes {dimension_semantics = [#tpu.dimension_semantics<arbitrary>, #tpu.dimension_semantics<arbitrary>], iteration_bounds = array<i64: 1, 1>, scalar_prefetch = 0 : i64, scratch_operands = 0 : i64, tpu.core_type = #tpu.core_type<tc>, window_params = [{transform_indices = @transform_0, window_bounds = array<i64: 16, 128>}, {transform_indices = @transform_1, window_bounds = array<i64: 16, 128>}, {transform_indices = @transform_2, window_bounds = array<i64: 8, 128>}]} {
    %c0_i32 = arith.constant 0 : i32
    %0 = arith.cmpi eq, %arg1, %c0_i32 : i32
    %1 = arith.extui %0 : i1 to i32
    %c0_i32_0 = arith.constant 0 : i32
    %2 = arith.cmpi ne, %1, %c0_i32_0 : i32
    scf.if %2 {
      %cst_11 = arith.constant 0.000000e+00 : f32
      %31 = vector.broadcast %cst_11 : f32 to vector<8x128xf32>
      %c0_12 = arith.constant 0 : index
      %c0_13 = arith.constant 0 : index
      %32 = vector.load %arg4[%c0_12, %c0_13] : memref<8x128xf32, #tpu.memory_space<vmem>>, vector<8x128xf32>
      tpu.vector_store %arg4[%c0_12, %c0_13], %31 {strides = array<i32>} : memref<8x128xf32, #tpu.memory_space<vmem>>, vector<8x128xf32>,
    } else {
    }
    %c0_i32_1 = arith.constant 0 : i32
    %c16_i32 = arith.constant 16 : i32
    %3 = arith.muli %c0_i32_1, %c16_i32 : i32
    %4 = tpu.assume_multiple %3, 16 : i32
    %5 = arith.index_cast %4 : i32 to index
    %c0 = arith.constant 0 : index
    %6 = vector.load %arg2[%5, %c0] : memref<16x128xf32, #tpu.memory_space<vmem>>, vector<16x128xf32>
    %7 = arith.index_cast %4 : i32 to index
    %c0_2 = arith.constant 0 : index
    %8 = vector.load %arg3[%7, %c0_2] : memref<16x128xf32, #tpu.memory_space<vmem>>, vector<16x128xf32>
    %cst = arith.constant 0.000000e+00 : f32
    %9 = vector.broadcast %cst : f32 to vector<16x128xf32>
    %10 = arith.maximumf %6, %9 : vector<16x128xf32>
    %11 = arith.mulf %6, %8 : vector<16x128xf32>
    %12 = arith.subf %10, %11 : vector<16x128xf32>
    %13 = math.absf %6 : vector<16x128xf32>
    %cst_3 = arith.constant 0.000000e+00 : f32
    %14 = vector.broadcast %cst_3 : f32 to vector<16x128xf32>
    %15 = arith.subf %14, %13 : vector<16x128xf32>
    %16 = math.exp %15 : vector<16x128xf32>
    %17 = math.log1p %16 : vector<16x128xf32>
    %18 = arith.addf %12, %17 : vector<16x128xf32>
    %19 = arith.subf %6, %8 : vector<16x128xf32>
    %cst_4 = arith.constant 0.699999988 : f32
    %20 = vector.broadcast %cst_4 : f32 to vector<16x128xf32>
    %21 = arith.mulf %20, %18 : vector<16x128xf32>
    %cst_5 = arith.constant 3.000000e-01 : f32
    %22 = vector.broadcast %cst_5 : f32 to vector<16x128xf32>
    %23 = arith.mulf %22, %19 : vector<16x128xf32>
    %24 = arith.mulf %23, %19 : vector<16x128xf32>
    %25 = arith.addf %21, %24 : vector<16x128xf32>
    %c0_6 = arith.constant 0 : index
    %c0_7 = arith.constant 0 : index
    %26 = vector.load %arg4[%c0_6, %c0_7] : memref<8x128xf32, #tpu.memory_space<vmem>>, vector<8x128xf32>
    %27 = vector.shape_cast %25 : vector<16x128xf32> to vector<2x8x128xf32>
    %cst_8 = arith.constant dense<0.000000e+00> : vector<8x128xf32>
    %28 = vector.multi_reduction <add>, %27, %cst_8 [0] : vector<2x8x128xf32> to vector<8x128xf32>
    %29 = arith.addf %26, %28 : vector<8x128xf32>
    %c0_9 = arith.constant 0 : index
    %c0_10 = arith.constant 0 : index
    %30 = vector.load %arg4[%c0_9, %c0_10] : memref<8x128xf32, #tpu.memory_space<vmem>>, vector<8x128xf32>
    tpu.vector_store %arg4[%c0_9, %c0_10], %29 {strides = array<i32>} : memref<8x128xf32, #tpu.memory_space<vmem>>, vector<8x128xf32>,
    %c1_i32 = arith.constant 1 : i32
    return
  }
  func.func @transform_0(%arg0: i32, %arg1: i32) -> (i32, i32) {
    %c1_i32 = arith.constant 1 : i32
    %0 = arith.muli %arg0, %c1_i32 : i32
    %1 = arith.addi %0, %arg1 : i32
    %c0_i32 = arith.constant 0 : i32
    %c0_i32_0 = arith.constant 0 : i32
    return %1, %c0_i32 : i32, i32
  }
  func.func @transform_1(%arg0: i32, %arg1: i32) -> (i32, i32) {
    %c1_i32 = arith.constant 1 : i32
    %0 = arith.muli %arg0, %c1_i32 : i32
    %1 = arith.addi %0, %arg1 : i32
    %c0_i32 = arith.constant 0 : i32
    %c0_i32_0 = arith.constant 0 : i32
    return %1, %c0_i32 : i32, i32
  }
  func.func @transform_2(%arg0: i32, %arg1: i32) -> (i32, i32) {
    %c0_i32 = arith.constant 0 : i32
    %c0_i32_0 = arith.constant 0 : i32
    return %arg0, %c0_i32 : i32, i32
  }
}

</mosaic_0001>

<llo_original>
// kernel: tpu_custom_call.1
$region0: #{tpu_custom_call.1}
  #allocation0 [shape = 'u32[]', space=smem, size = 0x4, offset = 0x4, fixed_abs, tag = 'smem constant byte address 0x4 - core index']
  #allocation1 [shape = 'u32[72,128]{1,0:T(1,128)}', space=vmem, size = 0x9000, scoped, tag = 'internal scratch']
  %s0 = inlined_call_operand.hbm [shape: f32[16,128], index: 0, kind: input, shape index: {}]
  %s1 = inlined_call_operand.hbm [shape: f32[16,128], index: 1, kind: input, shape index: {}]
  %s2 = inlined_call_operand.hbm [shape: f32[8,128], index: 2, kind: output, shape index: {}]
  %s3 = sld [smem:[#allocation0]]
  $region30: #{tpu_custom_call.1} parent=0
    _
  %s5 = ssub.s32 1, %s3
  %s6 = scalar_select 0, %s5, %s3
  $region1: #{tpu_custom_call.1} parent=0
    #allocation2 [shape = 'u8[8192]{0}', space=vmem, size = 0x2000, scoped, tag = 'input window, operand 0, single buffered']
    #allocation3 [shape = 's32[1]{0}', space=sflag, size = 0x4, scoped, tag = 'scoped memory for tpu_custom_call.1']
    #allocation4 [shape = 's32[1]{0}', space=sflag, size = 0x4, scoped, tag = 'scoped memory for tpu_custom_call.1']
    #allocation5 [shape = 'u8[8192]{0}', space=vmem, size = 0x2000, scoped, tag = 'input window, operand 1, single buffered']
    #allocation6 [shape = 's32[1]{0}', space=sflag, size = 0x4, scoped, tag = 'scoped memory for tpu_custom_call.1']
    #allocation7 [shape = 'u8[4096]{0}', space=vmem, size = 0x1000, scoped, tag = 'output window, operand 0, single buffered']
    %7 = vsyncpa [#allocation3], 0
    %8 = vsyncpa [#allocation6], 0
    %9 = vsyncpa [#allocation4], 0
    // Predicated region
    $region2: #{tpu_custom_call.1} parent=1 // pred_check
      _
    $region3: #{tpu_custom_call.1} parent=1 // pred_check_branch
      %11 = sbr.rel (0) target = $region5
    $region4: #{tpu_custom_call.1} parent=1 // pred_region
      %s12 = sadd.s32 0, 0
      %s13 = smul.u32 2, %s12
      %15 = vsyncadd [#allocation3], 0
      %s16 = smul.addr %s13, 8
      %s17 = scalar_lea.hbm %s0, %s16
      %s18 = sshll.u32 %s17, 4
      %s19 = int_to_ptr.hbm [resolvable:$true] %s18
      %s20 = sshll.u32 [#allocation2], 4
      %s21 = int_to_ptr.vmem [resolvable:$true] %s20
      %26 = dma.hbm_to_vmem [thread:$0]  %s19, 256, %s21, [#allocation3], 128, 128, 8
    $region5: #{tpu_custom_call.1} parent=1 // pred_fallthru
      _
    // Predicated region
    $region6: #{tpu_custom_call.1} parent=1 // pred_check
      _
    $region7: #{tpu_custom_call.1} parent=1 // pred_check_branch
      %28 = sbr.rel (0) target = $region9
    $region8: #{tpu_custom_call.1} parent=1 // pred_region
      %s29 = sadd.s32 0, 0
      %s30 = smul.u32 2, %s29
      %32 = vsyncadd [#allocation6], 0
      %s33 = smul.addr %s30, 8
      %s34 = scalar_lea.hbm %s1, %s33
      %s35 = sshll.u32 %s34, 4
      %s36 = int_to_ptr.hbm [resolvable:$true] %s35
      %s37 = sshll.u32 [#allocation5], 4
      %s38 = int_to_ptr.vmem [resolvable:$true] %s37
      %43 = dma.hbm_to_vmem [thread:$0]  %s36, 256, %s38, [#allocation6], 128, 128, 8
    $region9: #{tpu_custom_call.1} parent=1 // pred_fallthru
      _
    // Predicated region
    $region10: #{tpu_custom_call.1} parent=1 // pred_check
      _
    $region11: #{tpu_custom_call.1} parent=1 // pred_check_branch
      %45 = sbr.rel (0) target = $region13
    $region12: #{tpu_custom_call.1} parent=1 // pred_region
      %47 = dma.done [#allocation3], 256
    $region13: #{tpu_custom_call.1} parent=1 // pred_fallthru
      _
    // Predicated region
    $region14: #{tpu_custom_call.1} parent=1 // pred_check
      _
    $region15: #{tpu_custom_call.1} parent=1 // pred_check_branch
      %49 = sbr.rel (0) target = $region17
    $region16: #{tpu_custom_call.1} parent=1 // pred_region
      %51 = dma.done [#allocation6], 256
    $region17: #{tpu_custom_call.1} parent=1 // pred_fallthru
      _
    %s52 = sadd.s32 0, 0
    %s53 = smul.u32 2, %s52
    %s54 = sadd.s32 0, 0
    %s55 = smul.u32 2, %s54
    %p56 = scmp.eq.s32.totalorder 0, 0
    // Predicated region
    $region18: #{tpu_custom_call.1} parent=1 // pred_check
      %p57 = pneg %p56
    $region19: #{tpu_custom_call.1} parent=1 // pred_check_branch
      %59 = sbr.rel (%p57) target = $region21
    $region20: #{tpu_custom_call.1} parent=1 // pred_region
      %60 = vst [vmem:[#allocation7] sm:$0xff] 0.0
    $region21: #{tpu_custom_call.1} parent=1 // pred_fallthru
      _
    %v61 = vld [vmem:[#allocation2] sm:$0xff]
    %v62 = vld [vmem:[#allocation2 + $0x8] sm:$0xff]
    %v63 = vld [vmem:[#allocation5] sm:$0xff]
    %v64 = vld [vmem:[#allocation5 + $0x8] sm:$0xff]
    %v65 = vmax.f32 %v61, 0.0
    %v66 = vmax.f32 %v62, 0.0
    %v67 = vmul.f32 %v61, %v63
    %v68 = vmul.f32 %v62, %v64
    %v69 = vsub.f32 %v65, %v67
    %v70 = vsub.f32 %v66, %v68
    %v71 = vand.u32 2147483647, %v61
    %v72 = vand.u32 2147483647, %v62
    %v73 = vsub.f32 0.0, %v71
    %v74 = vsub.f32 0.0, %v72
    %v75 = vmul.f32 %v73, 1.442695
    %v76 = vpow.pop %v75
    %v77 = vmul.f32 %v74, 1.442695
    %v78 = vpow.pop %v77
    %v79 = vadd.f32 %v76, 1.0
    %v80 = vlog2.pop %v79
    %v81 = vmul.f32 %v80, 0.6931472
    %v82 = vmul.f32 -0.5, %v76
    %v83 = vadd.f32 %v82, 1.0
    %v84 = vmul.f32 %v83, %v76
    %v85 = vand.u32 2147483647, %v76
    %vm86 = vcmp.lt.f32.partialorder %v85, 0.0004427343
    %v87 = vsel %vm86, %v84, %v81
    %v88 = vadd.f32 %v78, 1.0
    %v89 = vlog2.pop %v88
    %v90 = vmul.f32 %v89, 0.6931472
    %v91 = vmul.f32 -0.5, %v78
    %v92 = vadd.f32 %v91, 1.0
    %v93 = vmul.f32 %v92, %v78
    %v94 = vand.u32 2147483647, %v78
    %vm95 = vcmp.lt.f32.partialorder %v94, 0.0004427343
    %v96 = vsel %vm95, %v93, %v90
    %v97 = vadd.f32 %v69, %v87
    %v98 = vadd.f32 %v70, %v96
    %v99 = vsub.f32 %v61, %v63
    %v100 = vsub.f32 %v62, %v64
    %v101 = vmul.f32 %v97, 0.7
    %v102 = vmul.f32 %v98, 0.7
    %v103 = vmul.f32 %v99, 0.3
    %v104 = vmul.f32 %v100, 0.3
    %v105 = vmul.f32 %v103, %v99
    %v106 = vmul.f32 %v104, %v100
    %v107 = vadd.f32 %v101, %v105
    %v108 = vadd.f32 %v102, %v106
    %v109 = vld [vmem:[#allocation7] sm:$0xff]
    %v110 = vadd.f32 %v107, %v108
    %v111 = vadd.f32 %v109, %v110
    %112 = vst [vmem:[#allocation7] sm:$0xff] %v111
    // Predicated region
    $region22: #{tpu_custom_call.1} parent=1 // pred_check
      _
    $region23: #{tpu_custom_call.1} parent=1 // pred_check_branch
      %114 = sbr.rel (0) target = $region25
    $region24: #{tpu_custom_call.1} parent=1 // pred_region
      %116 = vsyncadd [#allocation4], 0
      %s118 = sshll.u32 [#allocation7], 4
      %s119 = int_to_ptr.vmem [resolvable:$true] %s118
      %s120 = sshll.u32 %s2, 4
      %s121 = int_to_ptr.hbm [resolvable:$true] %s120
      %123 = dma.vmem_to_hbm [thread:$0]  %s119, 128, %s121, [#allocation4]
    $region25: #{tpu_custom_call.1} parent=1 // pred_fallthru
      _
    // Predicated region
    $region26: #{tpu_custom_call.1} parent=1 // pred_check
      _
    $region27: #{tpu_custom_call.1} parent=1 // pred_check_branch
      %125 = sbr.rel (0) target = $region29
    $region28: #{tpu_custom_call.1} parent=1 // pred_region
      %127 = dma.done [#allocation4], 128
    $region29: #{tpu_custom_call.1} parent=1 // pred_fallthru
      _
    %128 = vsyncpa [#allocation3], 1
    %129 = vsyncpa [#allocation6], 1
    %130 = vsyncpa [#allocation4], 1

</llo_original>
